<compile_context>
chip_gen: v5e
topology: v5e:2x2
jax: 0.10.0
libtpu: 0.0.40
codegen_flags: <defaults>
</compile_context>

<pallas_src>
import functools

import jax
import jax.numpy as jnp
from jax import lax
from jax.experimental import pallas as pl
from jax.experimental.pallas import tpu as pltpu

_SUBLANE = 8
_LANE = 128


def _cdiv(a, b):
    return -(-a // b)


def _round_up(a, b):
    return _cdiv(a, b) * b


def _mlp_kernel(x_ref, w1_ref, b1_ref, w2_ref, b2_ref, w3_ref, b3_ref, o_ref,
                *, rs):
    """Fused 3-layer MLP on one (bb, D) batch tile.

    x is cast to the weight dtype in-VMEM (VPU); matmuls run on the MXU with
    f32 accumulation; bias-add / ReLU stay in f32 on the VPU.  The tile is
    processed in `rs`-row sub-blocks so live f32 activations stay in vregs.
    """
    nsub = x_ref.shape[0] // rs  # static

    def body(r, carry):
        row = pl.multiple_of(r * rs, rs)
        xb = x_ref[pl.ds(row, rs), :].astype(w1_ref.dtype)  # in-kernel cast
        h = jnp.dot(xb, w1_ref[...], preferred_element_type=jnp.float32)
        h = jnp.maximum(h + b1_ref[...], 0.0)
        h = jnp.dot(h.astype(w2_ref.dtype), w2_ref[...],
                    preferred_element_type=jnp.float32)
        h = jnp.maximum(h + b2_ref[...], 0.0)
        o = jnp.dot(h.astype(w3_ref.dtype), w3_ref[...],
                    preferred_element_type=jnp.float32)
        o_ref[pl.ds(row, rs), :] = (o + b3_ref[...]).astype(o_ref.dtype)
        return carry

    lax.fori_loop(0, nsub, body, 0, unroll=True)


def prepare_mlp_params(w1, b1, w2, b2, w3, b3, compute_dtype=jnp.bfloat16):
    """One-time parameter prep (do NOT call per forward step):
       * cast weights to the MXU compute dtype (bf16 by default),
       * zero-pad the output layer to a multiple of 128 lanes (lane-dense,
         unmasked stores),
       * reshape biases (1-D or 2-D) to (1, O) float32.
    Returns a tuple consumed by mlp_forward."""
    def bias2d(b):
        return b.reshape(1, -1).astype(jnp.float32)

    o = w3.shape[1]
    o_pad = max(_LANE, _round_up(o, _LANE))
    w3p = w3
    b3p = b3.reshape(1, -1)
    if o_pad != o:
        w3p = jnp.pad(w3p, ((0, 0), (0, o_pad - o)))
        b3p = jnp.pad(b3p, ((0, 0), (0, o_pad - o)))
    return (w1.astype(compute_dtype), bias2d(b1),
            w2.astype(compute_dtype), bias2d(b2),
            w3p.astype(compute_dtype), b3p.astype(jnp.float32))


@functools.partial(jax.jit,
                   static_argnames=("dim_out", "block_b", "row_sub",
                                    "out_dtype"))
def mlp_forward(x, params, dim_out=None, block_b=512, row_sub=256,
                out_dtype=None):
    """Fused 3-layer MLP forward.

    x: (B, ...) flattened to (B, D_in).  params: output of prepare_mlp_params.
    dim_out=None returns the 128-lane padded output (no slice pass);
    out_dtype=None stores in x.dtype (pass jnp.bfloat16 to halve writeback).
    """
    assert block_b % _SUBLANE == 0, "block_b must be a multiple of 8"
    assert row_sub % _SUBLANE == 0, "row_sub must be a multiple of 8"
    w1, b1, w2, b2, w3, b3 = params

    B = x.shape[0]
    x2 = x.reshape(B, -1)            # no cast, no pad: kernel reads & casts
    D = x2.shape[1]
    O_pad = w3.shape[1]
    odt = x.dtype if out_dtype is None else out_dtype

    # --- batch tile: big enough to amortize step overhead, >=4 grid steps for
    # large B (v7x dual-TC "parallel" axis); tiny batches use one full tile.
    bb = max(64, _round_up(_cdiv(B, 4), _SUBLANE))
    bb = min(bb, block_b)
    if bb >= B:
        bb = B                       # single full-batch tile (block == dim)
    num_blocks = _cdiv(B, bb)        # ragged last block handled by masking

    # --- in-kernel row sub-block size (caps vreg pressure at large bb) ------
    rs = min(row_sub, bb)
    if bb % rs != 0:
        rs = bb

    resident = lambda a: pl.BlockSpec(a.shape, lambda i: (0, 0))

    out = pl.pallas_call(
        functools.partial(_mlp_kernel, rs=rs),
        out_shape=jax.ShapeDtypeStruct((B, O_pad), odt),
        grid_spec=pltpu.PrefetchScalarGridSpec(
            num_scalar_prefetch=0,
            grid=(num_blocks,),
            in_specs=[
                pl.BlockSpec((bb, D), lambda i: (i, 0)),   # streaming x tile
                resident(w1), resident(b1),                # layer 1 (resident)
                resident(w2), resident(b2),                # layer 2 (resident)
                resident(w3), resident(b3),                # layer 3 (resident)
            ],
            out_specs=pl.BlockSpec((bb, O_pad), lambda i: (i, 0)),
        ),
        compiler_params=pltpu.CompilerParams(
            dimension_semantics=("parallel",),  # batch axis shards across TCs
        ),
    )(x2, w1, b1, w2, b2, w3, b3)

    if dim_out is not None and dim_out != O_pad:
        out = out[:, :dim_out]
    return out


def init_linear(key, fan_in, fan_out, dtype=jnp.float32):
    """Deterministic init mimicking nn.Linear (uniform +/- 1/sqrt(fan_in)),
    with PyTorch-style 1-D bias."""
    kw, kb = jax.random.split(key)
    bound = fan_in ** -0.5
    w = jax.random.uniform(kw, (fan_in, fan_out), dtype, -bound, bound)
    b = jax.random.uniform(kb, (fan_out,), dtype, -bound, bound)
    return w, b


def mlp_reference(x, w1, b1, w2, b2, w3, b3, compute_dtype=jnp.float32):
    """Pure-JAX reference replicating the kernel's cast/accumulate scheme."""
    h = x.reshape(x.shape[0], -1)
    for w, b, act in ((w1, b1, True), (w2, b2, True), (w3, b3, False)):
        h = jnp.dot(h.astype(compute_dtype), w.astype(compute_dtype),
                    preferred_element_type=jnp.float32) + b.astype(jnp.float32)
        if act:
            h = jnp.maximum(h, 0.0)
    return h


if __name__ == "__main__":
    # Small shapes consistent with the module defaults:
    # MLP(dim_in=48, dim_out=10, dim_hidden=64, num_layer=2, activation=ReLU)
    dim_hidden = 64
    dim_out = 10
    batch = 20

    key = jax.random.PRNGKey(0)
    kx, k1, k2, k3 = jax.random.split(key, 4)

    # 4x4x3 "image" input; forward flattens it to dim_in = 48.
    x = jax.random.normal(kx, (batch, 4, 4, 3), jnp.float32)
    dim_in = 4 * 4 * 3

    w1, b1 = init_linear(k1, dim_in, dim_hidden)
    w2, b2 = init_linear(k2, dim_hidden, dim_hidden)
    w3, b3 = init_linear(k3, dim_hidden, dim_out)

    # 1) f32 precision path with a tiny batch tile: exercises the multi-step
    #    grid (20 rows -> 3 x 8-row tiles) with a masked ragged last block and
    #    the lane-dense 128-padded output store.
    params_f32 = prepare_mlp_params(w1, b1, w2, b2, w3, b3,
                                    compute_dtype=jnp.float32)
    out_f32 = mlp_forward(x, params_f32, dim_out=dim_out, block_b=8)
    out_f32 = jax.block_until_ready(out_f32)
    ref_f32 = mlp_reference(x, w1, b1, w2, b2, w3, b3, jnp.float32)
    assert out_f32.shape == (batch, dim_out)
    assert jnp.allclose(out_f32, ref_f32, atol=1e-4, rtol=1e-4)

    # 2) Default fast path: bf16 MXU operands (cast in-kernel) + f32
    #    accumulation; batch <= 64 so a single full-batch tile.
    params_bf16 = prepare_mlp_params(w1, b1, w2, b2, w3, b3)   # bf16 default
    out_bf16 = mlp_forward(x, params_bf16, dim_out=dim_out)
    out_bf16 = jax.block_until_ready(out_bf16)
    ref_bf16 = mlp_reference(x, w1, b1, w2, b2, w3, b3, jnp.bfloat16)
    assert out_bf16.shape == (batch, dim_out)
    assert jnp.allclose(out_bf16, ref_bf16, atol=1e-3, rtol=1e-3)

    print("KERNEL_OK")
</pallas_src>

<mosaic_0001>
module attributes {stable_mosaic.version = 11 : i64} {
  func.func @_mlp_kernel(%arg0: i32, %arg1: memref<8x48xf32, #tpu.memory_space<vmem>>, %arg2: memref<48x64xf32, #tpu.memory_space<vmem>>, %arg3: memref<1x64xf32, #tpu.memory_space<vmem>>, %arg4: memref<64x64xf32, #tpu.memory_space<vmem>>, %arg5: memref<1x64xf32, #tpu.memory_space<vmem>>, %arg6: memref<64x128xf32, #tpu.memory_space<vmem>>, %arg7: memref<1x128xf32, #tpu.memory_space<vmem>>, %arg8: memref<8x128xf32, #tpu.memory_space<vmem>>) attributes {dimension_semantics = [#tpu.dimension_semantics<parallel>], iteration_bounds = array<i64: 3>, scalar_prefetch = 0 : i64, scratch_operands = 0 : i64, tpu.core_type = #tpu.core_type<tc>, window_params = [{transform_indices = @transform_0, window_bounds = array<i64: 8, 48>}, {pipeline_mode = #tpu.pipeline_mode<synchronous>, transform_indices = @transform_1, window_bounds = array<i64: 48, 64>}, {pipeline_mode = #tpu.pipeline_mode<synchronous>, transform_indices = @transform_2, window_bounds = array<i64: 1, 64>}, {pipeline_mode = #tpu.pipeline_mode<synchronous>, transform_indices = @transform_3, window_bounds = array<i64: 64, 64>}, {pipeline_mode = #tpu.pipeline_mode<synchronous>, transform_indices = @transform_4, window_bounds = array<i64: 1, 64>}, {pipeline_mode = #tpu.pipeline_mode<synchronous>, transform_indices = @transform_5, window_bounds = array<i64: 64, 128>}, {pipeline_mode = #tpu.pipeline_mode<synchronous>, transform_indices = @transform_6, window_bounds = array<i64: 1, 128>}, {transform_indices = @transform_7, window_bounds = array<i64: 8, 128>}]} {
    %c0_i32 = arith.constant 0 : i32
    %c8_i32 = arith.constant 8 : i32
    %0 = arith.muli %c0_i32, %c8_i32 : i32
    %1 = tpu.assume_multiple %0, 8 : i32
    %2 = arith.index_cast %1 : i32 to index
    %c0 = arith.constant 0 : index
    %3 = vector.load %arg1[%2, %c0] : memref<8x48xf32, #tpu.memory_space<vmem>>, vector<8x48xf32>
    %c0_0 = arith.constant 0 : index
    %c0_1 = arith.constant 0 : index
    %4 = vector.load %arg2[%c0_0, %c0_1] : memref<48x64xf32, #tpu.memory_space<vmem>>, vector<48x64xf32>
    %cst = arith.constant dense<0.000000e+00> : vector<8x64xf32>
    %5 = tpu.matmul %3, %4, %cst {dimension_numbers = #tpu.dot_dimension_numbers<[1], [0], [0], [1], [0, 0, 1, 1], [], []>} : vector<8x48xf32>, vector<48x64xf32>, vector<8x64xf32> -> vector<8x64xf32>
    %c0_2 = arith.constant 0 : index
    %c0_3 = arith.constant 0 : index
    %6 = vector.load %arg3[%c0_2, %c0_3] : memref<1x64xf32, #tpu.memory_space<vmem>>, vector<1x64xf32>
    %7 = vector.broadcast %6 : vector<1x64xf32> to vector<8x64xf32>
    %8 = arith.addf %5, %7 : vector<8x64xf32>
    %cst_4 = arith.constant 0.000000e+00 : f32
    %9 = vector.broadcast %cst_4 : f32 to vector<8x64xf32>
    %10 = arith.maximumf %8, %9 : vector<8x64xf32>
    %c0_5 = arith.constant 0 : index
    %c0_6 = arith.constant 0 : index
    %11 = vector.load %arg4[%c0_5, %c0_6] : memref<64x64xf32, #tpu.memory_space<vmem>>, vector<64x64xf32>
    %cst_7 = arith.constant dense<0.000000e+00> : vector<8x64xf32>
    %12 = tpu.matmul %10, %11, %cst_7 {dimension_numbers = #tpu.dot_dimension_numbers<[1], [0], [0], [1], [0, 0, 1, 1], [], []>} : vector<8x64xf32>, vector<64x64xf32>, vector<8x64xf32> -> vector<8x64xf32>
    %c0_8 = arith.constant 0 : index
    %c0_9 = arith.constant 0 : index
    %13 = vector.load %arg5[%c0_8, %c0_9] : memref<1x64xf32, #tpu.memory_space<vmem>>, vector<1x64xf32>
    %14 = vector.broadcast %13 : vector<1x64xf32> to vector<8x64xf32>
    %15 = arith.addf %12, %14 : vector<8x64xf32>
    %cst_10 = arith.constant 0.000000e+00 : f32
    %16 = vector.broadcast %cst_10 : f32 to vector<8x64xf32>
    %17 = arith.maximumf %15, %16 : vector<8x64xf32>
    %c0_11 = arith.constant 0 : index
    %c0_12 = arith.constant 0 : index
    %18 = vector.load %arg6[%c0_11, %c0_12] : memref<64x128xf32, #tpu.memory_space<vmem>>, vector<64x128xf32>
    %cst_13 = arith.constant dense<0.000000e+00> : vector<8x128xf32>
    %19 = tpu.matmul %17, %18, %cst_13 {dimension_numbers = #tpu.dot_dimension_numbers<[1], [0], [0], [1], [0, 0, 1, 1], [], []>} : vector<8x64xf32>, vector<64x128xf32>, vector<8x128xf32> -> vector<8x128xf32>
    %c0_14 = arith.constant 0 : index
    %c0_15 = arith.constant 0 : index
    %20 = vector.load %arg7[%c0_14, %c0_15] : memref<1x128xf32, #tpu.memory_space<vmem>>, vector<1x128xf32>
    %21 = vector.broadcast %20 : vector<1x128xf32> to vector<8x128xf32>
    %22 = arith.addf %19, %21 : vector<8x128xf32>
    %23 = arith.index_cast %1 : i32 to index
    %c0_16 = arith.constant 0 : index
    %24 = vector.load %arg8[%23, %c0_16] : memref<8x128xf32, #tpu.memory_space<vmem>>, vector<8x128xf32>
    tpu.vector_store %arg8[%23, %c0_16], %22 {strides = array<i32>} : memref<8x128xf32, #tpu.memory_space<vmem>>, vector<8x128xf32>,
    %c1_i32 = arith.constant 1 : i32
    return
  }
  func.func @transform_0(%arg0: i32) -> (i32, i32) {
    %c0_i32 = arith.constant 0 : i32
    %c0_i32_0 = arith.constant 0 : i32
    return %arg0, %c0_i32 : i32, i32
  }
  func.func @transform_1(%arg0: i32) -> (i32, i32) {
    %c0_i32 = arith.constant 0 : i32
    %c0_i32_0 = arith.constant 0 : i32
    %c0_i32_1 = arith.constant 0 : i32
    return %c0_i32, %c0_i32_0 : i32, i32
  }
  func.func @transform_2(%arg0: i32) -> (i32, i32) {
    %c0_i32 = arith.constant 0 : i32
    %c0_i32_0 = arith.constant 0 : i32
    %c0_i32_1 = arith.constant 0 : i32
    return %c0_i32, %c0_i32_0 : i32, i32
  }
  func.func @transform_3(%arg0: i32) -> (i32, i32) {
    %c0_i32 = arith.constant 0 : i32
    %c0_i32_0 = arith.constant 0 : i32
    %c0_i32_1 = arith.constant 0 : i32
    return %c0_i32, %c0_i32_0 : i32, i32
  }
  func.func @transform_4(%arg0: i32) -> (i32, i32) {
    %c0_i32 = arith.constant 0 : i32
    %c0_i32_0 = arith.constant 0 : i32
    %c0_i32_1 = arith.constant 0 : i32
    return %c0_i32, %c0_i32_0 : i32, i32
  }
  func.func @transform_5(%arg0: i32) -> (i32, i32) {
    %c0_i32 = arith.constant 0 : i32
    %c0_i32_0 = arith.constant 0 : i32
    %c0_i32_1 = arith.constant 0 : i32
    return %c0_i32, %c0_i32_0 : i32, i32
  }
  func.func @transform_6(%arg0: i32) -> (i32, i32) {
    %c0_i32 = arith.constant 0 : i32
    %c0_i32_0 = arith.constant 0 : i32
    %c0_i32_1 = arith.constant 0 : i32
    return %c0_i32, %c0_i32_0 : i32, i32
  }
  func.func @transform_7(%arg0: i32) -> (i32, i32) {
    %c0_i32 = arith.constant 0 : i32
    %c0_i32_0 = arith.constant 0 : i32
    return %arg0, %c0_i32 : i32, i32
  }
}

</mosaic_0001>

<llo_original>
// kernel: mlp_forward.1
$region0: #{mlp_forward.1}
  #allocation0 [shape = 'u32[]', space=smem, size = 0x4, offset = 0x4, fixed_abs, tag = 'smem constant byte address 0x4 - core index']
  #allocation1 [shape = 'u32[72,128]{1,0:T(1,128)}', space=vmem, size = 0x9000, scoped, tag = 'internal scratch']
  %s0 = inlined_call_operand.vmem [shape: f32[20,48], index: 0, kind: input, shape index: {}]
  %s1 = inlined_call_operand.vmem [shape: f32[48,64], index: 1, kind: input, shape index: {}]
  %s2 = inlined_call_operand.vmem [shape: f32[1,64], index: 2, kind: input, shape index: {}]
  %s3 = inlined_call_operand.vmem [shape: f32[64,64], index: 3, kind: input, shape index: {}]
  %s4 = inlined_call_operand.vmem [shape: f32[1,64], index: 4, kind: input, shape index: {}]
  %s5 = inlined_call_operand.vmem [shape: f32[64,128], index: 5, kind: input, shape index: {}]
  %s6 = inlined_call_operand.vmem [shape: f32[1,128], index: 6, kind: input, shape index: {}]
  %s7 = inlined_call_operand.vmem [shape: f32[20,128], index: 7, kind: output, shape index: {}]
  %s8 = sld [smem:[#allocation0]]
  $region61: #{mlp_forward.1} parent=0
    _
  %s10 = ssub.s32 1, %s8
  %s11 = scalar_select 0, %s10, %s8
  loop: start=0, step=1, limit=5
  $region2: #{mlp_forward.1} parent=0 // loop_pre_header
    _
  $region3: #{mlp_forward.1} parent=0 // loop_header
    %s13 = sphi 0, %s17
    %p14 = scmp.ge.s32.totalorder %s13, 5
    %s23 = sphi 0, %s25
    %s26 = sphi 0, %s23
    %s27 = sphi 0, %s26
    %s43 = sphi 0, %s27
    %s47 = sphi 0, %s47
    %s49 = sphi 0, %s47
    %s50 = sphi 0, %s49
    %s64 = sphi 0, %s50
    %s68 = sphi 0, %s68
    %s70 = sphi 0, %s68
    %s71 = sphi 0, %s70
    %s85 = sphi 0, %s71
    %s89 = sphi 0, %s89
    %s91 = sphi 0, %s89
    %s92 = sphi 0, %s91
    %s106 = sphi 0, %s92
    %s110 = sphi 0, %s110
    %s112 = sphi 0, %s110
    %s113 = sphi 0, %s112
    %s127 = sphi 0, %s113
    %s131 = sphi 0, %s131
    %s133 = sphi 0, %s131
    %s134 = sphi 0, %s133
    %s148 = sphi 0, %s134
    %s152 = sphi 0, %s152
    %s154 = sphi 0, %s152
    %s155 = sphi 0, %s154
    %s169 = sphi 0, %s155
    %s175 = sphi 0, %s177
    %s178 = sphi 0, %s175
    %s179 = sphi 0, %s178
    %s195 = sphi 0, %s179
  $region4: #{mlp_forward.1} parent=0 // loop_header_branch
    %16 = sbr.rel (%p14) target = $region8
  $region5: #{mlp_forward.1} parent=0 // loop_body
    %s18 = ssub.s32 %s13, 1
    %s19 = ssub.s32 %s13, 2
    %s20 = sadd.s32 %s13, 1
    %s21 = ssub.s32 %s13, %s20
    %p22 = scmp.eq.s32.totalorder %s21, 0
    %s24 = sadd.s32 %s23, 1
    %s25 = scalar_select %p22, %s23, %s24
    %p28 = pneg %p22
    %p29 = scmp.eq.s32.totalorder %s13, 2
    %p30 = por %p28, %p29
    %p31 = scmp.ne.s32.totalorder %s23, %s26
    %p32 = scmp.eq.s32.totalorder %s13, 0
    %p33 = por %p31, %p32
    %p34 = scmp.ne.s32.totalorder %s23, %s26
    %p35 = scmp.eq.s32.totalorder %s18, 2
    %p36 = por %p34, %p35
    %p37 = scmp.ne.s32.totalorder %s26, %s27
    %p38 = scmp.eq.s32.totalorder %s18, 0
    %p39 = por %p37, %p38
    %p40 = scmp.ne.s32.totalorder %s26, %s27
    %p41 = scmp.eq.s32.totalorder %s19, 2
    %p42 = por %p40, %p41
    %p44 = scmp.ne.s32.totalorder %s27, %s43
    %p45 = scmp.eq.s32.totalorder %s19, 0
    %p46 = por %p44, %p45
    %s48 = sadd.s32 %s47, 1
    %p51 = scmp.eq.s32.totalorder %s13, 2
    %p52 = scmp.ne.s32.totalorder %s47, %s49
    %p53 = scmp.eq.s32.totalorder %s13, 0
    %p54 = por %p52, %p53
    %p55 = scmp.ne.s32.totalorder %s47, %s49
    %p56 = scmp.eq.s32.totalorder %s18, 2
    %p57 = por %p55, %p56
    %p58 = scmp.ne.s32.totalorder %s49, %s50
    %p59 = scmp.eq.s32.totalorder %s18, 0
    %p60 = por %p58, %p59
    %p61 = scmp.ne.s32.totalorder %s49, %s50
    %p62 = scmp.eq.s32.totalorder %s19, 2
    %p63 = por %p61, %p62
    %p65 = scmp.ne.s32.totalorder %s50, %s64
    %p66 = scmp.eq.s32.totalorder %s19, 0
    %p67 = por %p65, %p66
    %s69 = sadd.s32 %s68, 1
    %p72 = scmp.eq.s32.totalorder %s13, 2
    %p73 = scmp.ne.s32.totalorder %s68, %s70
    %p74 = scmp.eq.s32.totalorder %s13, 0
    %p75 = por %p73, %p74
    %p76 = scmp.ne.s32.totalorder %s68, %s70
    %p77 = scmp.eq.s32.totalorder %s18, 2
    %p78 = por %p76, %p77
    %p79 = scmp.ne.s32.totalorder %s70, %s71
    %p80 = scmp.eq.s32.totalorder %s18, 0
    %p81 = por %p79, %p80
    %p82 = scmp.ne.s32.totalorder %s70, %s71
    %p83 = scmp.eq.s32.totalorder %s19, 2
    %p84 = por %p82, %p83
    %p86 = scmp.ne.s32.totalorder %s71, %s85
    %p87 = scmp.eq.s32.totalorder %s19, 0
    %p88 = por %p86, %p87
    %s90 = sadd.s32 %s89, 1
    %p93 = scmp.eq.s32.totalorder %s13, 2
    %p94 = scmp.ne.s32.totalorder %s89, %s91
    %p95 = scmp.eq.s32.totalorder %s13, 0
    %p96 = por %p94, %p95
    %p97 = scmp.ne.s32.totalorder %s89, %s91
    %p98 = scmp.eq.s32.totalorder %s18, 2
    %p99 = por %p97, %p98
    %p100 = scmp.ne.s32.totalorder %s91, %s92
    %p101 = scmp.eq.s32.totalorder %s18, 0
    %p102 = por %p100, %p101
    %p103 = scmp.ne.s32.totalorder %s91, %s92
    %p104 = scmp.eq.s32.totalorder %s19, 2
    %p105 = por %p103, %p104
    %p107 = scmp.ne.s32.totalorder %s92, %s106
    %p108 = scmp.eq.s32.totalorder %s19, 0
    %p109 = por %p107, %p108
    %s111 = sadd.s32 %s110, 1
    %p114 = scmp.eq.s32.totalorder %s13, 2
    %p115 = scmp.ne.s32.totalorder %s110, %s112
    %p116 = scmp.eq.s32.totalorder %s13, 0
    %p117 = por %p115, %p116
    %p118 = scmp.ne.s32.totalorder %s110, %s112
    %p119 = scmp.eq.s32.totalorder %s18, 2
    %p120 = por %p118, %p119
    %p121 = scmp.ne.s32.totalorder %s112, %s113
    %p122 = scmp.eq.s32.totalorder %s18, 0
    %p123 = por %p121, %p122
    %p124 = scmp.ne.s32.totalorder %s112, %s113
    %p125 = scmp.eq.s32.totalorder %s19, 2
    %p126 = por %p124, %p125
    %p128 = scmp.ne.s32.totalorder %s113, %s127
    %p129 = scmp.eq.s32.totalorder %s19, 0
    %p130 = por %p128, %p129
    %s132 = sadd.s32 %s131, 1
    %p135 = scmp.eq.s32.totalorder %s13, 2
    %p136 = scmp.ne.s32.totalorder %s131, %s133
    %p137 = scmp.eq.s32.totalorder %s13, 0
    %p138 = por %p136, %p137
    %p139 = scmp.ne.s32.totalorder %s131, %s133
    %p140 = scmp.eq.s32.totalorder %s18, 2
    %p141 = por %p139, %p140
    %p142 = scmp.ne.s32.totalorder %s133, %s134
    %p143 = scmp.eq.s32.totalorder %s18, 0
    %p144 = por %p142, %p143
    %p145 = scmp.ne.s32.totalorder %s133, %s134
    %p146 = scmp.eq.s32.totalorder %s19, 2
    %p147 = por %p145, %p146
    %p149 = scmp.ne.s32.totalorder %s134, %s148
    %p150 = scmp.eq.s32.totalorder %s19, 0
    %p151 = por %p149, %p150
    %s153 = sadd.s32 %s152, 1
    %p156 = scmp.eq.s32.totalorder %s13, 2
    %p157 = scmp.ne.s32.totalorder %s152, %s154
    %p158 = scmp.eq.s32.totalorder %s13, 0
    %p159 = por %p157, %p158
    %p160 = scmp.ne.s32.totalorder %s152, %s154
    %p161 = scmp.eq.s32.totalorder %s18, 2
    %p162 = por %p160, %p161
    %p163 = scmp.ne.s32.totalorder %s154, %s155
    %p164 = scmp.eq.s32.totalorder %s18, 0
    %p165 = por %p163, %p164
    %p166 = scmp.ne.s32.totalorder %s154, %s155
    %p167 = scmp.eq.s32.totalorder %s19, 2
    %p168 = por %p166, %p167
    %p170 = scmp.ne.s32.totalorder %s155, %s169
    %p171 = scmp.eq.s32.totalorder %s19, 0
    %p172 = por %p170, %p171
    %s173 = ssub.s32 %s13, %s20
    %p174 = scmp.eq.s32.totalorder %s173, 0
    %s176 = sadd.s32 %s175, 1
    %s177 = scalar_select %p174, %s175, %s176
    %p180 = pneg %p174
    %p181 = scmp.eq.s32.totalorder %s13, 2
    %p182 = por %p180, %p181
    %p183 = scmp.ne.s32.totalorder %s175, %s178
    %p184 = scmp.eq.s32.totalorder %s13, 0
    %p185 = por %p183, %p184
    %p186 = scmp.ne.s32.totalorder %s175, %s178
    %p187 = scmp.eq.s32.totalorder %s18, 2
    %p188 = por %p186, %p187
    %p189 = scmp.ne.s32.totalorder %s178, %s179
    %p190 = scmp.eq.s32.totalorder %s18, 0
    %p191 = por %p189, %p190
    %p192 = scmp.ne.s32.totalorder %s178, %s179
    %p193 = scmp.eq.s32.totalorder %s19, 2
    %p194 = por %p192, %p193
    %p196 = scmp.ne.s32.totalorder %s179, %s195
    %p197 = scmp.eq.s32.totalorder %s19, 0
    %p198 = por %p196, %p197
    %p199 = scmp.le.s32.totalorder 1, %s13
    %p200 = scmp.lt.s32.totalorder %s13, 4
    %p201 = pnand %p199, %p200
    %p202 = pneg %p201
    // Predicated region
    $region9: #{mlp_forward.1} parent=5 // pred_check
      _
    $region10: #{mlp_forward.1} parent=5 // pred_check_branch
      %204 = sbr.rel (%p201) target = $region12
    $region11: #{mlp_forward.1} parent=5 // pred_region
      %s205 = ssub.s32 %s13, 1
      // Predicated region
      $region13: #{mlp_forward.1} parent=11 // pred_check
        %p206 = pneg %p60
      $region14: #{mlp_forward.1} parent=11 // pred_check_branch
        %208 = sbr.rel (%p206) target = $region16
      $region15: #{mlp_forward.1} parent=11 // pred_region
        _
      $region16: #{mlp_forward.1} parent=11 // pred_fallthru
        _
      // Predicated region
      $region17: #{mlp_forward.1} parent=11 // pred_check
        %p209 = pneg %p81
      $region18: #{mlp_forward.1} parent=11 // pred_check_branch
        %211 = sbr.rel (%p209) target = $region20
      $region19: #{mlp_forward.1} parent=11 // pred_region
        _
      $region20: #{mlp_forward.1} parent=11 // pred_fallthru
        _
      // Predicated region
      $region21: #{mlp_forward.1} parent=11 // pred_check
        %p212 = pneg %p102
      $region22: #{mlp_forward.1} parent=11 // pred_check_branch
        %214 = sbr.rel (%p212) target = $region24
      $region23: #{mlp_forward.1} parent=11 // pred_region
        _
      $region24: #{mlp_forward.1} parent=11 // pred_fallthru
        _
      // Predicated region
      $region25: #{mlp_forward.1} parent=11 // pred_check
        %p215 = pneg %p123
      $region26: #{mlp_forward.1} parent=11 // pred_check_branch
        %217 = sbr.rel (%p215) target = $region28
      $region27: #{mlp_forward.1} parent=11 // pred_region
        _
      $region28: #{mlp_forward.1} parent=11 // pred_fallthru
        _
      // Predicated region
      $region29: #{mlp_forward.1} parent=11 // pred_check
        %p218 = pneg %p144
      $region30: #{mlp_forward.1} parent=11 // pred_check_branch
        %220 = sbr.rel (%p218) target = $region32
      $region31: #{mlp_forward.1} parent=11 // pred_region
        _
      $region32: #{mlp_forward.1} parent=11 // pred_fallthru
        _
      // Predicated region
      $region33: #{mlp_forward.1} parent=11 // pred_check
        %p221 = pneg %p165
      $region34: #{mlp_forward.1} parent=11 // pred_check_branch
        %223 = sbr.rel (%p221) target = $region36
      $region35: #{mlp_forward.1} parent=11 // pred_region
        _
      $region36: #{mlp_forward.1} parent=11 // pred_fallthru
        _
    $region12: #{mlp_forward.1} parent=5 // pred_fallthru
      _
    %p224 = scmp.lt.s32.totalorder %s13, 3
    // Predicated region
    $region37: #{mlp_forward.1} parent=5 // pred_check
      %p225 = pneg %p224
    $region38: #{mlp_forward.1} parent=5 // pred_check_branch
      %227 = sbr.rel (%p225) target = $region40
    $region39: #{mlp_forward.1} parent=5 // pred_region
      // Predicated region
      $region41: #{mlp_forward.1} parent=39 // pred_check
        %p228 = pneg %p33
      $region42: #{mlp_forward.1} parent=39 // pred_check_branch
        %230 = sbr.rel (%p228) target = $region44
      $region43: #{mlp_forward.1} parent=39 // pred_region
        %p231 = scmp.lt.s32.totalorder %s13, 2
        %s232 = scalar_select %p231, %s13, 2
        %s233 = smul.addr %s232, 8
        %s234 = scalar_lea.vmem %s0, %s233
      $region44: #{mlp_forward.1} parent=39 // pred_fallthru
        _
    $region40: #{mlp_forward.1} parent=5 // pred_fallthru
      _
    %p235 = scmp.le.s32.totalorder 1, %s13
    %p236 = scmp.lt.s32.totalorder %s13, 4
    %p237 = pnand %p235, %p236
    %p238 = pneg %p237
    // Predicated region
    $region45: #{mlp_forward.1} parent=5 // pred_check
      _
    $region46: #{mlp_forward.1} parent=5 // pred_check_branch
      %240 = sbr.rel (%p237) target = $region48
    $region47: #{mlp_forward.1} parent=5 // pred_region
      %s241 = ssub.s32 %s13, 1
      %p242 = scmp.lt.s32.totalorder %s18, 2
      %s243 = scalar_select %p242, %s18, 2
      %s244 = smul.addr %s243, 8
      %s245 = scalar_lea.vmem %s0, %s244
      %p246 = pneg %p39
      %p247 = pneg %p36
      %p248 = pneg %p60
      %p249 = pneg %p57
      %p250 = pneg %p81
      %p251 = pneg %p78
      %p252 = pneg %p102
      %p253 = pneg %p99
      %p254 = pneg %p123
      %p255 = pneg %p120
      %p256 = pneg %p144
      %p257 = pneg %p141
      %p258 = pneg %p165
      %p259 = pneg %p162
      %p260 = pneg %p191
      %p261 = pneg %p188
      %p262 = scmp.lt.s32.totalorder %s18, 2
      %s263 = scalar_select %p262, %s18, 2
      %s264 = smul.addr %s263, 8
      %s265 = scalar_lea.vmem %s7, %s264
      %p266 = scmp.lt.s32.totalorder %s18, 2
      %s267 = scalar_select %p266, %s18, 2
      %s268 = smul.addr %s267, 8
      %s269 = scalar_lea.vmem %s0, %s268
      %p270 = scmp.lt.s32.totalorder %s18, 2
      %s271 = scalar_select %p270, %s18, 2
      %s272 = smul.addr %s271, 8
      %s273 = scalar_lea.vmem %s7, %s272
      %v274 = vld [vmem:[%s269] sm:$0xff]
      %v275 = vld [vmem:[%s1] sm:$0xff]
      %v276 = vld [vmem:[%s1 + $0x8] sm:$0xff]
      %v277 = vld [vmem:[%s1 + $0x10] sm:$0xff]
      %v278 = vld [vmem:[%s1 + $0x18] sm:$0xff]
      %v279 = vld [vmem:[%s1 + $0x20] sm:$0xff]
      %v280 = vld [vmem:[%s1 + $0x28] sm:$0xff]
      %v281 = vld [vmem:[%s2] sm:$0x1]
      %v283 = vperm.slane %v281, 0
      %vm285 = vcmask 392192
      %v287 = vsel %vm285, %v274, 0
      %289 = vmatpush.msra.mxu0 0.0
      %290 = vmatpush.msra.mxu0 0.0
      %291 = vmatpush.msra.mxu0 0.0
      %292 = vmatpush.msra.mxu0 0.0
      %293 = vmatpush.msra.mxu0 0.0
      %294 = vmatpush.msra.mxu0 0.0
      %295 = vmatpush.msra.mxu0 0.0
      %296 = vmatpush.msra.mxu0 0.0
      %297 = vmatpush.msra.mxu0 0.0
      %298 = vmatpush.msra.mxu0 0.0
      %299 = vmatpush.msra.mxu0 %v280
      %300 = vmatpush.msra.mxu0 %v279
      %301 = vmatpush.msra.mxu0 %v278
      %302 = vmatpush.msra.mxu0 %v277
      %303 = vmatpush.msra.mxu0 %v276
      %304 = vmatpush.msra.mxu0 %v275
      %305 = vmatmul.f32.gmra.mxu0 %v287
      %v306 = vpop.f32.mrf.mxu0
      %v307 = vadd.f32 %v283, %v306
      %308 = vdwg.mxu0
      %v309 = vmax.f32 %v307, 0.0
      %v310 = vld [vmem:[%s3] sm:$0xff]
      %v311 = vld [vmem:[%s3 + $0x8] sm:$0xff]
      %v312 = vld [vmem:[%s3 + $0x10] sm:$0xff]
      %v313 = vld [vmem:[%s3 + $0x18] sm:$0xff]
      %v314 = vld [vmem:[%s3 + $0x20] sm:$0xff]
      %v315 = vld [vmem:[%s3 + $0x28] sm:$0xff]
      %v316 = vld [vmem:[%s3 + $0x30] sm:$0xff]
      %v317 = vld [vmem:[%s3 + $0x38] sm:$0xff]
      %v318 = vld [vmem:[%s4] sm:$0x1]
      %v320 = vperm.slane %v318, 0
      %vm322 = vcmask 523264
      %v324 = vsel %vm322, %v309, 0
      %326 = vmatpush.msra.mxu0 0.0
      %327 = vmatpush.msra.mxu0 0.0
      %328 = vmatpush.msra.mxu0 0.0
      %329 = vmatpush.msra.mxu0 0.0
      %330 = vmatpush.msra.mxu0 0.0
      %331 = vmatpush.msra.mxu0 0.0
      %332 = vmatpush.msra.mxu0 0.0
      %333 = vmatpush.msra.mxu0 0.0
      %334 = vmatpush.msra.mxu0 %v317
      %335 = vmatpush.msra.mxu0 %v316
      %336 = vmatpush.msra.mxu0 %v315
      %337 = vmatpush.msra.mxu0 %v314
      %338 = vmatpush.msra.mxu0 %v313
      %339 = vmatpush.msra.mxu0 %v312
      %340 = vmatpush.msra.mxu0 %v311
      %341 = vmatpush.msra.mxu0 %v310
      %342 = vmatmul.f32.gmra.mxu0 %v324
      %v343 = vpop.f32.mrf.mxu0
      %v344 = vadd.f32 %v320, %v343
      %345 = vdwg.mxu0
      %v346 = vmax.f32 %v344, 0.0
      %v347 = vld [vmem:[%s5] sm:$0xff]
      %v348 = vld [vmem:[%s5 + $0x8] sm:$0xff]
      %v349 = vld [vmem:[%s5 + $0x10] sm:$0xff]
      %v350 = vld [vmem:[%s5 + $0x18] sm:$0xff]
      %v351 = vld [vmem:[%s5 + $0x20] sm:$0xff]
      %v352 = vld [vmem:[%s5 + $0x28] sm:$0xff]
      %v353 = vld [vmem:[%s5 + $0x30] sm:$0xff]
      %v354 = vld [vmem:[%s5 + $0x38] sm:$0xff]
      %v355 = vld [vmem:[%s6] sm:$0x1]
      %v357 = vperm.slane %v355, 0
      %v360 = vsel %vm322, %v346, 0
      %362 = vmatpush.msra.mxu0 0.0
      %363 = vmatpush.msra.mxu0 0.0
      %364 = vmatpush.msra.mxu0 0.0
      %365 = vmatpush.msra.mxu0 0.0
      %366 = vmatpush.msra.mxu0 0.0
      %367 = vmatpush.msra.mxu0 0.0
      %368 = vmatpush.msra.mxu0 0.0
      %369 = vmatpush.msra.mxu0 0.0
      %370 = vmatpush.msra.mxu0 %v354
      %371 = vmatpush.msra.mxu0 %v353
      %372 = vmatpush.msra.mxu0 %v352
      %373 = vmatpush.msra.mxu0 %v351
      %374 = vmatpush.msra.mxu0 %v350
      %375 = vmatpush.msra.mxu0 %v349
      %376 = vmatpush.msra.mxu0 %v348
      %377 = vmatpush.msra.mxu0 %v347
      %378 = vmatmul.f32.gmra.mxu0 %v360
      %v379 = vpop.f32.mrf.mxu0
      %v380 = vadd.f32 %v357, %v379
      %381 = vdwg.mxu0
      %382 = vst [vmem:[%s273] sm:$0xff] %v380
      %p383 = scmp.lt.s32.totalorder %s18, 2
      %s384 = scalar_select %p383, %s18, 2
      %s385 = smul.addr %s384, 8
      %s386 = scalar_lea.vmem %s7, %s385
      // Predicated region
      $region49: #{mlp_forward.1} parent=47 // pred_check
        %p387 = pneg %p188
      $region50: #{mlp_forward.1} parent=47 // pred_check_branch
        %389 = sbr.rel (%p387) target = $region52
      $region51: #{mlp_forward.1} parent=47 // pred_region
        _
      $region52: #{mlp_forward.1} parent=47 // pred_fallthru
        _
    $region48: #{mlp_forward.1} parent=5 // pred_fallthru
      _
    %p390 = scmp.le.s32.totalorder 2, %s13
    // Predicated region
    $region53: #{mlp_forward.1} parent=5 // pred_check
      %p391 = pneg %p390
    $region54: #{mlp_forward.1} parent=5 // pred_check_branch
      %393 = sbr.rel (%p391) target = $region56
    $region55: #{mlp_forward.1} parent=5 // pred_region
      %s394 = ssub.s32 %s13, 2
      // Predicated region
      $region57: #{mlp_forward.1} parent=55 // pred_check
        %p395 = pneg %p194
      $region58: #{mlp_forward.1} parent=55 // pred_check_branch
        %397 = sbr.rel (%p395) target = $region60
      $region59: #{mlp_forward.1} parent=55 // pred_region
        %p398 = scmp.lt.s32.totalorder %s19, 2
        %s399 = scalar_select %p398, %s19, 2
        %s400 = smul.addr %s399, 8
        %s401 = scalar_lea.vmem %s7, %s400
      $region60: #{mlp_forward.1} parent=55 // pred_fallthru
        _
    $region56: #{mlp_forward.1} parent=5 // pred_fallthru
      _
  $region6: #{mlp_forward.1} parent=0 // loop_footer
    %s17 = sadd.s32 1, %s13
  $region7: #{mlp_forward.1} parent=0 // loop_footer_branch
    %12 = sbr.rel target = $region3
  $region8: #{mlp_forward.1} parent=0 // loop_exit
    _

</llo_original>
